<compile_context>
chip_gen: v7x
topology: tpu7x:2x2x1
jax: 0.10.0
libtpu: 0.0.40
codegen_flags: <defaults>
</compile_context>

<pallas_src>
import functools

import jax
import jax.numpy as jnp
from jax import lax
from jax.experimental import pallas as pl
from jax.experimental.pallas import tpu as pltpu


def _round_up(x, m):
    return ((x + m - 1) // m) * m


def _vmem_capacity_bytes():
    """Physical VMEM per TensorCore; conservative fallback if not queryable."""
    try:
        cap = int(pltpu.get_tpu_info().vmem_capacity_bytes)
        if cap >= 32 * 1024 * 1024:
            return cap
    except Exception:
        pass
    return 64 * 1024 * 1024  # v7x per-TC size: safe lower bound everywhere.


def _gram_loss_kernel(pred_ref, target_ref, out_ref, acc_ref, *, c, rem, fuse):
    """One (batch, k) grid step.

    pred_ref / target_ref : (1, c, tk) tile of the current batch element.
    out_ref               : (1, 8, 128) per-batch partial-sum tile.
    acc_ref               : (2c, 2c) f32 if fuse else (c, c) f32 diff accumulator.
    """
    k_idx = pl.program_id(1)
    n_k = pl.num_programs(1)

    p = pred_ref[0]    # (c, tk) native dtype, straight to the MXU
    t = target_ref[0]  # (c, tk)

    if rem:  # hw % tk != 0: zero the garbage tail lanes (only hits last k step).
        tk = p.shape[-1]
        lane = lax.broadcasted_iota(jnp.int32, p.shape, 1)
        limit = jnp.where(k_idx == n_k - 1, rem, tk)
        keep = lane < limit
        p = jnp.where(keep, p, jnp.zeros_like(p))
        t = jnp.where(keep, t, jnp.zeros_like(t))

    # Contract over the HW axis of both operands -> no transpose needed.
    dn = (((1,), (1,)), ((), ()))
    if fuse:
        # One MXU-filling matmul producing both raw Grams (diagonal c x c blocks).
        s = jnp.concatenate([p, t], axis=0)                      # (2c, tk)
        g = lax.dot_general(s, s, dimension_numbers=dn,
                            preferred_element_type=jnp.float32)  # (2c, 2c)
    else:
        g = (lax.dot_general(p, p, dimension_numbers=dn,
                             preferred_element_type=jnp.float32)
             - lax.dot_general(t, t, dimension_numbers=dn,
                               preferred_element_type=jnp.float32))

    @pl.when(k_idx == 0)
    def _():
        acc_ref[...] = g

    @pl.when(k_idx > 0)
    def _():
        acc_ref[...] += g

    # Finalize this batch element: unscaled L1 between the two raw Grams.
    @pl.when(k_idx == n_k - 1)
    def _():
        acc = acc_ref[...]
        if fuse:
            diff = acc[:c, :c] - acc[c:, c:]
        else:
            diff = acc
        partial = jnp.sum(jnp.abs(diff))
        out_ref[...] = jnp.full(out_ref.shape, partial, dtype=out_ref.dtype)


def gram_loss(pred, target, *, tk_cap=16384, use_bf16=False):
    """Pallas equivalent of GramLoss.forward(pred, target). Inputs are NCHW."""
    assert pred.shape == target.shape, (pred.shape, target.shape)
    b, c, h, w = pred.shape
    hw = h * w

    if use_bf16:
        pred = pred.astype(jnp.bfloat16)
    target = target.astype(pred.dtype)
    itemsize = jnp.dtype(pred.dtype).itemsize

    # Fused (2c,tk)x(tk,2c) matmul only while 2c still fits one MXU tile.
    fuse = (2 * c) <= 256
    acc_dim = 2 * c if fuse else c
    acc_bytes = _round_up(acc_dim, 8) * _round_up(acc_dim, 128) * 4

    # ---- VMEM budgeting (adaptive per chip generation) ----------------------
    vmem_cap = _vmem_capacity_bytes()
    # ~85% of physical VMEM: ~54 MiB on v7x (64 MiB/TC), ~108 MiB on v5e/v6e.
    vmem_limit = min(int(vmem_cap * 0.85), vmem_cap - 8 * 1024 * 1024)
    margin = 2 * 1024 * 1024  # output buffers + Mosaic internal scratch headroom
    input_budget = max(vmem_limit - acc_bytes - margin, 4 * 1024 * 1024)

    # 2 inputs x 2 pipeline buffers, channel axis padded to the sublane packing.
    sublane = 8 * max(1, 4 // itemsize)
    c_pad = _round_up(c, sublane)
    per_chunk = 2 * 2 * c_pad * 128 * itemsize       # bytes per 128-lane K chunk
    fit_chunks = max(1, input_budget // per_chunk)
    tk = 128 * int(min(fit_chunks, max(1, tk_cap // 128), pl.cdiv(hw, 128)))
    n_k = pl.cdiv(hw, tk)
    rem = hw - (n_k - 1) * tk
    if rem == tk:
        rem = 0                                      # exact divide: no masking

    pred_f = pred.reshape(b, c, hw)
    target_f = target.reshape(b, c, hw)

    kernel = functools.partial(_gram_loss_kernel, c=c, rem=rem, fuse=fuse)

    cost = pl.CostEstimate(
        flops=(8 if fuse else 4) * b * c * c * n_k * tk,
        transcendentals=0,
        bytes_accessed=2 * b * c * hw * itemsize + b * 8 * 128 * 4,
    )

    partials = pl.pallas_call(
        kernel,
        out_shape=jax.ShapeDtypeStruct((b, 8, 128), jnp.float32),
        grid_spec=pltpu.PrefetchScalarGridSpec(
            num_scalar_prefetch=0,
            grid=(b, n_k),
            in_specs=[
                pl.BlockSpec((1, c, tk), lambda i, k: (i, 0, k)),
                pl.BlockSpec((1, c, tk), lambda i, k: (i, 0, k)),
            ],
            out_specs=pl.BlockSpec((1, 8, 128), lambda i, k: (i, 0, 0)),
            scratch_shapes=[
                pltpu.VMEM((acc_dim, acc_dim), jnp.float32),
            ],
        ),
        compiler_params=pltpu.CompilerParams(
            # Batch axis is truly parallel (per-batch partial outputs); the HW/K
            # reduction axis is innermost and "arbitrary".
            dimension_semantics=("parallel", "arbitrary"),
            vmem_limit_bytes=int(vmem_limit),
        ),
        cost_estimate=cost,
    )(pred_f, target_f)

    # partial_b = sum |gram_p_raw - gram_t_raw| over c*c entries.  Fold the
    # 1/(c*h*w) Gram scale and the mean over b*c*c entries into one divide.
    per_batch = partials[:, 0, 0]
    return jnp.sum(per_batch) / jnp.float32(b * c * c * c * hw)


def _reference_gram_loss(pred, target):
    b, c, h, w = pred.shape
    pf = pred.reshape(b, c, h * w).astype(jnp.float32)
    tf = target.reshape(b, c, h * w).astype(jnp.float32)
    gp = jnp.einsum("bcn,bdn->bcd", pf, pf,
                    precision=jax.lax.Precision.HIGHEST) / (c * h * w)
    gt = jnp.einsum("bcn,bdn->bcd", tf, tf,
                    precision=jax.lax.Precision.HIGHEST) / (c * h * w)
    return jnp.mean(jnp.abs(gp - gt))


if __name__ == "__main__":
    key = jax.random.PRNGKey(0)

    # Test 1: small NCHW input, fused small-C path, exact K tiling.
    k1, k2 = jax.random.split(key)
    b, c, h, w = 2, 4, 16, 16
    pred = jax.random.normal(k1, (b, c, h, w), dtype=jnp.float32)
    target = jax.random.normal(k2, (b, c, h, w), dtype=jnp.float32)
    loss = jax.block_until_ready(gram_loss(pred, target))
    ref = jax.block_until_ready(_reference_gram_loss(pred, target))
    assert jnp.allclose(loss, ref, rtol=1e-5, atol=1e-6), (loss, ref)

    # Test 2: non-fused (larger C) path, multi-step K accumulation with a ragged
    # HW tail masked in-kernel (hw = 192 with tk = 128, no HBM padding).
    k3, k4 = jax.random.split(k1)
    b2, c2, h2, w2 = 1, 160, 16, 12
    pred2 = jax.random.normal(k3, (b2, c2, h2, w2), dtype=jnp.float32)
    target2 = jax.random.normal(k4, (b2, c2, h2, w2), dtype=jnp.float32)
    loss2 = jax.block_until_ready(gram_loss(pred2, target2, tk_cap=128))
    ref2 = jax.block_until_ready(_reference_gram_loss(pred2, target2))
    assert jnp.allclose(loss2, ref2, rtol=1e-5, atol=1e-6), (loss2, ref2)

    # Test 3: opt-in bf16 feeding of the MXU (looser tolerance by construction).
    loss3 = jax.block_until_ready(gram_loss(pred, target, use_bf16=True))
    assert jnp.allclose(loss3, ref, rtol=5e-2, atol=5e-3), (loss3, ref)

    print("KERNEL_OK")
</pallas_src>

<mosaic_0001>
module attributes {stable_mosaic.version = 11 : i64} {
  func.func @_gram_loss_kernel(%arg0: i32, %arg1: i32, %arg2: memref<1x4x256xf32, #tpu.memory_space<vmem>>, %arg3: memref<1x4x256xf32, #tpu.memory_space<vmem>>, %arg4: memref<1x8x128xf32, #tpu.memory_space<vmem>>, %arg5: memref<8x8xf32, #tpu.memory_space<vmem>>) attributes {dimension_semantics = [#tpu.dimension_semantics<parallel>, #tpu.dimension_semantics<arbitrary>], iteration_bounds = array<i64: 2, 1>, scalar_prefetch = 0 : i64, scratch_operands = 1 : i64, tpu.core_type = #tpu.core_type<tc>, window_params = [{transform_indices = @transform_0, window_bounds = array<i64: 1, 4, 256>}, {transform_indices = @transform_1, window_bounds = array<i64: 1, 4, 256>}, {transform_indices = @transform_2, window_bounds = array<i64: 1, 8, 128>}]} {
    %c0 = arith.constant 0 : index
    %c0_0 = arith.constant 0 : index
    %c0_1 = arith.constant 0 : index
    %0 = vector.load %arg2[%c0, %c0_0, %c0_1] : memref<1x4x256xf32, #tpu.memory_space<vmem>>, vector<1x4x256xf32>
    %1 = vector.shape_cast %0 : vector<1x4x256xf32> to vector<4x256xf32>
    %c0_2 = arith.constant 0 : index
    %c0_3 = arith.constant 0 : index
    %c0_4 = arith.constant 0 : index
    %2 = vector.load %arg3[%c0_2, %c0_3, %c0_4] : memref<1x4x256xf32, #tpu.memory_space<vmem>>, vector<1x4x256xf32>
    %3 = vector.shape_cast %2 : vector<1x4x256xf32> to vector<4x256xf32>
    %4 = tpu.concatenate %1, %3 in 0 : vector<4x256xf32>, vector<4x256xf32> -> vector<8x256xf32>
    %cst = arith.constant dense<0.000000e+00> : vector<8x8xf32>
    %5 = tpu.matmul %4, %4, %cst {dimension_numbers = #tpu.dot_dimension_numbers<[1], [1], [0], [0], [0, 0, 1, 0], [], []>} : vector<8x256xf32>, vector<8x256xf32>, vector<8x8xf32> -> vector<8x8xf32>
    %c0_i32 = arith.constant 0 : i32
    %6 = arith.cmpi eq, %arg1, %c0_i32 : i32
    %7 = arith.extui %6 : i1 to i32
    %c0_i32_5 = arith.constant 0 : i32
    %8 = arith.cmpi ne, %7, %c0_i32_5 : i32
    scf.if %8 {
      %c0_10 = arith.constant 0 : index
      %c0_11 = arith.constant 0 : index
      %15 = vector.load %arg5[%c0_10, %c0_11] : memref<8x8xf32, #tpu.memory_space<vmem>>, vector<8x8xf32>
      tpu.vector_store %arg5[%c0_10, %c0_11], %5 {strides = array<i32>} : memref<8x8xf32, #tpu.memory_space<vmem>>, vector<8x8xf32>,
    } else {
    }
    %c0_i32_6 = arith.constant 0 : i32
    %9 = arith.cmpi sgt, %arg1, %c0_i32_6 : i32
    %10 = arith.extui %9 : i1 to i32
    %c0_i32_7 = arith.constant 0 : i32
    %11 = arith.cmpi ne, %10, %c0_i32_7 : i32
    scf.if %11 {
      %c0_10 = arith.constant 0 : index
      %c0_11 = arith.constant 0 : index
      %15 = vector.load %arg5[%c0_10, %c0_11] : memref<8x8xf32, #tpu.memory_space<vmem>>, vector<8x8xf32>
      %16 = arith.addf %15, %5 : vector<8x8xf32>
      %c0_12 = arith.constant 0 : index
      %c0_13 = arith.constant 0 : index
      %17 = vector.load %arg5[%c0_12, %c0_13] : memref<8x8xf32, #tpu.memory_space<vmem>>, vector<8x8xf32>
      tpu.vector_store %arg5[%c0_12, %c0_13], %16 {strides = array<i32>} : memref<8x8xf32, #tpu.memory_space<vmem>>, vector<8x8xf32>,
    } else {
    }
    %c0_i32_8 = arith.constant 0 : i32
    %12 = arith.cmpi eq, %arg1, %c0_i32_8 : i32
    %13 = arith.extui %12 : i1 to i32
    %c0_i32_9 = arith.constant 0 : i32
    %14 = arith.cmpi ne, %13, %c0_i32_9 : i32
    scf.if %14 {
      %c0_10 = arith.constant 0 : index
      %c0_11 = arith.constant 0 : index
      %15 = vector.load %arg5[%c0_10, %c0_11] : memref<8x8xf32, #tpu.memory_space<vmem>>, vector<8x8xf32>
      %16 = vector.extract_strided_slice %15 {offsets = [0, 0], sizes = [4, 4], strides = [1, 1]} : vector<8x8xf32> to vector<4x4xf32>
      %17 = vector.extract_strided_slice %15 {offsets = [4, 4], sizes = [4, 4], strides = [1, 1]} : vector<8x8xf32> to vector<4x4xf32>
      %18 = arith.subf %16, %17 : vector<4x4xf32>
      %19 = math.absf %18 : vector<4x4xf32>
      %20 = vector.shape_cast %19 : vector<4x4xf32> to vector<1x4x4xf32>
      %cst_12 = arith.constant dense<0.000000e+00> : vector<1xf32>
      %21 = vector.multi_reduction <add>, %20, %cst_12 [1, 2] : vector<1x4x4xf32> to vector<1xf32>
      %22 = vector.shape_cast %21 : vector<1xf32> to vector<1x1x1xf32>
      %23 = vector.extract %22[0, 0, 0] : f32 from vector<1x1x1xf32>
      %24 = vector.broadcast %23 : f32 to vector<1x8x128xf32>
      %c0_13 = arith.constant 0 : index
      %c0_14 = arith.constant 0 : index
      %c0_15 = arith.constant 0 : index
      %25 = vector.load %arg4[%c0_13, %c0_14, %c0_15] : memref<1x8x128xf32, #tpu.memory_space<vmem>>, vector<1x8x128xf32>
      tpu.vector_store %arg4[%c0_13, %c0_14, %c0_15], %24 {strides = array<i32>} : memref<1x8x128xf32, #tpu.memory_space<vmem>>, vector<1x8x128xf32>,
    } else {
    }
    return
  }
  func.func @transform_0(%arg0: i32, %arg1: i32) -> (i32, i32, i32) {
    %c0_i32 = arith.constant 0 : i32
    %c0_i32_0 = arith.constant 0 : i32
    return %arg0, %c0_i32, %arg1 : i32, i32, i32
  }
  func.func @transform_1(%arg0: i32, %arg1: i32) -> (i32, i32, i32) {
    %c0_i32 = arith.constant 0 : i32
    %c0_i32_0 = arith.constant 0 : i32
    return %arg0, %c0_i32, %arg1 : i32, i32, i32
  }
  func.func @transform_2(%arg0: i32, %arg1: i32) -> (i32, i32, i32) {
    %c0_i32 = arith.constant 0 : i32
    %c0_i32_0 = arith.constant 0 : i32
    %c0_i32_1 = arith.constant 0 : i32
    return %arg0, %c0_i32, %c0_i32_0 : i32, i32, i32
  }
}

</mosaic_0001>

<llo_original>
// kernel: tpu_custom_call.1
$region0: #{tpu_custom_call.1}
  #allocation0 [shape = 'u32[]', space=smem, size = 0x4, offset = 0x4, fixed_abs, tag = 'smem constant byte address 0x4 - core index']
  #allocation1 [shape = 'u32[144,128]{1,0:T(1,128)}', space=vmem, size = 0x12000, scoped, tag = 'internal scratch']
  #allocation2 [shape = 'f32[8,8]{1,0:T(8,128)}', space=vmem, size = 0x1000, scoped, tag = 'scratch operand']
  %s0 = inlined_call_operand.hbm [shape: f32[2,4,256], index: 0, kind: input, shape index: {}]
  %s1 = inlined_call_operand.hbm [shape: f32[2,4,256], index: 1, kind: input, shape index: {}]
  %s2 = inlined_call_operand.hbm [shape: f32[2,8,128], index: 2, kind: output, shape index: {}]
  %s3 = sld [smem:[#allocation0]]
  $region61: #{tpu_custom_call.1} parent=0
    _
  %s5 = ssub.s32 1, %s3
  %s6 = scalar_select 0, %s5, %s3
  $region1: #{tpu_custom_call.1} parent=0
    #allocation3 [shape = 'u8[8192]{0}', space=vmem, size = 0x2000, scoped, tag = 'input window, operand 0']
    #allocation4 [shape = 's32[2]{0}', space=sflag, size = 0x8, scoped, tag = 'scoped memory for tpu_custom_call.1']
    #allocation5 [shape = 's32[2]{0}', space=sflag, size = 0x8, scoped, tag = 'scoped memory for tpu_custom_call.1']
    #allocation6 [shape = 'u8[8192]{0}', space=vmem, size = 0x2000, scoped, tag = 'input window, operand 1']
    #allocation7 [shape = 's32[2]{0}', space=sflag, size = 0x8, scoped, tag = 'scoped memory for tpu_custom_call.1']
    #allocation8 [shape = 'u8[8192]{0}', space=vmem, size = 0x2000, scoped, tag = 'output window, operand 0']
    %7 = vsyncpa [#allocation4], 0
    %s8 = scalar_lea.sflag [#allocation4], 1
    %9 = vsyncpa %s8, 0
    %10 = vsyncpa [#allocation7], 0
    %s11 = scalar_lea.sflag [#allocation7], 1
    %12 = vsyncpa %s11, 0
    %13 = vsyncpa [#allocation5], 0
    %s14 = scalar_lea.sflag [#allocation5], 1
    %15 = vsyncpa %s14, 0
    loop: start=0, step=1, limit=4
    $region2: #{tpu_custom_call.1} parent=1 // loop_pre_header
      _
    $region3: #{tpu_custom_call.1} parent=1 // loop_header
      %s17 = sphi 0, %s21
      %p18 = scmp.ge.s32.totalorder %s17, 4
      %s24 = sphi 0, %s36
      %s25 = sphi 0, %s32
      %s26 = sphi 0, %s24
      %s27 = sphi 0, %s25
      %s28 = sphi 0, %s26
      %s29 = sphi 0, %s27
      %s41 = sphi 0, %s43
      %s44 = sphi 0, %s41
      %s45 = sphi 0, %s44
      %s61 = sphi 0, %s45
      %s69 = sphi 0, %s71
      %s72 = sphi 0, %s69
      %s73 = sphi 0, %s72
      %s89 = sphi 0, %s73
      %s95 = sphi 0, %s97
      %s98 = sphi 0, %s95
      %s99 = sphi 0, %s98
      %s115 = sphi 0, %s99
    $region4: #{tpu_custom_call.1} parent=1 // loop_header_branch
      %20 = sbr.rel (%p18) target = $region8
    $region5: #{tpu_custom_call.1} parent=1 // loop_body
      %s22 = ssub.s32 %s17, 1
      %s23 = ssub.s32 %s17, 2
      %s30 = sadd.s32 1, %s25
      %p31 = scmp.ge.s32.totalorder %s30, 1
      %s32 = scalar_select %p31, 0, %s30
      %s33 = sadd.s32 1, %s24
      %s34 = scalar_select %p31, %s33, %s24
      %p35 = scmp.ge.s32.totalorder %s34, 2
      %s36 = scalar_select %p35, 0, %s34
      %s37 = ssub.s32 %s24, %s36
      %s38 = ssub.s32 %s25, %s32
      %s39 = sor.u32 %s37, %s38
      %p40 = scmp.eq.s32.totalorder %s39, 0
      %s42 = sadd.s32 %s41, 1
      %s43 = scalar_select %p40, %s41, %s42
      %p46 = pneg %p40
      %p47 = scmp.eq.s32.totalorder %s17, 1
      %p48 = por %p46, %p47
      %p49 = scmp.ne.s32.totalorder %s41, %s44
      %p50 = scmp.eq.s32.totalorder %s17, 0
      %p51 = por %p49, %p50
      %p52 = scmp.ne.s32.totalorder %s41, %s44
      %p53 = scmp.eq.s32.totalorder %s22, 1
      %p54 = por %p52, %p53
      %p55 = scmp.ne.s32.totalorder %s44, %s45
      %p56 = scmp.eq.s32.totalorder %s22, 0
      %p57 = por %p55, %p56
      %p58 = scmp.ne.s32.totalorder %s44, %s45
      %p59 = scmp.eq.s32.totalorder %s23, 1
      %p60 = por %p58, %p59
      %p62 = scmp.ne.s32.totalorder %s45, %s61
      %p63 = scmp.eq.s32.totalorder %s23, 0
      %p64 = por %p62, %p63
      %s65 = ssub.s32 %s24, %s36
      %s66 = ssub.s32 %s25, %s32
      %s67 = sor.u32 %s65, %s66
      %p68 = scmp.eq.s32.totalorder %s67, 0
      %s70 = sadd.s32 %s69, 1
      %s71 = scalar_select %p68, %s69, %s70
      %p74 = pneg %p68
      %p75 = scmp.eq.s32.totalorder %s17, 1
      %p76 = por %p74, %p75
      %p77 = scmp.ne.s32.totalorder %s69, %s72
      %p78 = scmp.eq.s32.totalorder %s17, 0
      %p79 = por %p77, %p78
      %p80 = scmp.ne.s32.totalorder %s69, %s72
      %p81 = scmp.eq.s32.totalorder %s22, 1
      %p82 = por %p80, %p81
      %p83 = scmp.ne.s32.totalorder %s72, %s73
      %p84 = scmp.eq.s32.totalorder %s22, 0
      %p85 = por %p83, %p84
      %p86 = scmp.ne.s32.totalorder %s72, %s73
      %p87 = scmp.eq.s32.totalorder %s23, 1
      %p88 = por %p86, %p87
      %p90 = scmp.ne.s32.totalorder %s73, %s89
      %p91 = scmp.eq.s32.totalorder %s23, 0
      %p92 = por %p90, %p91
      %s93 = ssub.s32 %s24, %s36
      %p94 = scmp.eq.s32.totalorder %s93, 0
      %s96 = sadd.s32 %s95, 1
      %s97 = scalar_select %p94, %s95, %s96
      %p100 = pneg %p94
      %p101 = scmp.eq.s32.totalorder %s17, 1
      %p102 = por %p100, %p101
      %p103 = scmp.ne.s32.totalorder %s95, %s98
      %p104 = scmp.eq.s32.totalorder %s17, 0
      %p105 = por %p103, %p104
      %p106 = scmp.ne.s32.totalorder %s95, %s98
      %p107 = scmp.eq.s32.totalorder %s22, 1
      %p108 = por %p106, %p107
      %p109 = scmp.ne.s32.totalorder %s98, %s99
      %p110 = scmp.eq.s32.totalorder %s22, 0
      %p111 = por %p109, %p110
      %p112 = scmp.ne.s32.totalorder %s98, %s99
      %p113 = scmp.eq.s32.totalorder %s23, 1
      %p114 = por %p112, %p113
      %p116 = scmp.ne.s32.totalorder %s99, %s115
      %p117 = scmp.eq.s32.totalorder %s23, 0
      %p118 = por %p116, %p117
      %p119 = scmp.le.s32.totalorder 1, %s17
      %p120 = scmp.lt.s32.totalorder %s17, 3
      %p121 = pnand %p119, %p120
      %p122 = pneg %p121
      // Predicated region
      $region9: #{tpu_custom_call.1} parent=5 // pred_check
        _
      $region10: #{tpu_custom_call.1} parent=5 // pred_check_branch
        %124 = sbr.rel (%p121) target = $region12
      $region11: #{tpu_custom_call.1} parent=5 // pred_region
        %s125 = ssub.s32 %s17, 1
      $region12: #{tpu_custom_call.1} parent=5 // pred_fallthru
        _
      %p126 = scmp.lt.s32.totalorder %s17, 2
      // Predicated region
      $region13: #{tpu_custom_call.1} parent=5 // pred_check
        %p127 = pneg %p126
      $region14: #{tpu_custom_call.1} parent=5 // pred_check_branch
        %129 = sbr.rel (%p127) target = $region16
      $region15: #{tpu_custom_call.1} parent=5 // pred_region
        // Predicated region
        $region17: #{tpu_custom_call.1} parent=15 // pred_check
          %p130 = pneg %p51
        $region18: #{tpu_custom_call.1} parent=15 // pred_check_branch
          %132 = sbr.rel (%p130) target = $region20
        $region19: #{tpu_custom_call.1} parent=15 // pred_region
          %s133 = sand.u32 %s41, 1
          %s134 = scalar_lea.sflag [#allocation4], %s133
          %s135 = sand.u32 %s41, 1
          %s136 = smul.addr %s135, 8
          %s137 = scalar_lea.vmem [#allocation3], %s136
          %s138 = smul.u32 2, %s25
          %s140 = ssub.s32 128, 128
          %141 = vsyncadd %s134, %s140
          %s142 = smul.addr %s24, 2
          %s143 = sadd.s32 %s138, %s142
          %s144 = smul.addr %s143, 64
          %s145 = scalar_lea.hbm %s0, %s144
          %s147 = sshll.u32 %s137, 4
          %s148 = int_to_ptr.vmem [resolvable:$true] %s147
          %150 = dma.hbm_to_vmem [thread:$0]  %s145, 128, %s148, %s134
        $region20: #{tpu_custom_call.1} parent=15 // pred_fallthru
          _
        // Predicated region
        $region21: #{tpu_custom_call.1} parent=15 // pred_check
          %p151 = pneg %p79
        $region22: #{tpu_custom_call.1} parent=15 // pred_check_branch
          %153 = sbr.rel (%p151) target = $region24
        $region23: #{tpu_custom_call.1} parent=15 // pred_region
          %s154 = sand.u32 %s69, 1
          %s155 = scalar_lea.sflag [#allocation7], %s154
          %s156 = sand.u32 %s69, 1
          %s157 = smul.addr %s156, 8
          %s158 = scalar_lea.vmem [#allocation6], %s157
          %s159 = smul.u32 2, %s25
          %s161 = ssub.s32 128, 128
          %162 = vsyncadd %s155, %s161
          %s163 = smul.addr %s24, 2
          %s164 = sadd.s32 %s159, %s163
          %s165 = smul.addr %s164, 64
          %s166 = scalar_lea.hbm %s1, %s165
          %s168 = sshll.u32 %s158, 4
          %s169 = int_to_ptr.vmem [resolvable:$true] %s168
          %171 = dma.hbm_to_vmem [thread:$0]  %s166, 128, %s169, %s155
        $region24: #{tpu_custom_call.1} parent=15 // pred_fallthru
          _
      $region16: #{tpu_custom_call.1} parent=5 // pred_fallthru
        _
      %p172 = scmp.le.s32.totalorder 1, %s17
      %p173 = scmp.lt.s32.totalorder %s17, 3
      %p174 = pnand %p172, %p173
      %p175 = pneg %p174
      // Predicated region
      $region25: #{tpu_custom_call.1} parent=5 // pred_check
        _
      $region26: #{tpu_custom_call.1} parent=5 // pred_check_branch
        %177 = sbr.rel (%p174) target = $region28
      $region27: #{tpu_custom_call.1} parent=5 // pred_region
        %s178 = ssub.s32 %s17, 1
        %s179 = sand.u32 %s44, 1
        %s180 = scalar_lea.sflag [#allocation4], %s179
        %s181 = sand.u32 %s44, 1
        %s182 = smul.addr %s181, 8
        %s183 = scalar_lea.vmem [#allocation3], %s182
        // Predicated region
        $region29: #{tpu_custom_call.1} parent=27 // pred_check
          %p184 = pneg %p57
        $region30: #{tpu_custom_call.1} parent=27 // pred_check_branch
          %186 = sbr.rel (%p184) target = $region32
        $region31: #{tpu_custom_call.1} parent=27 // pred_region
          %187 = dma.done %s180, 128
        $region32: #{tpu_custom_call.1} parent=27 // pred_fallthru
          _
        %s188 = sand.u32 %s72, 1
        %s189 = scalar_lea.sflag [#allocation7], %s188
        %s190 = sand.u32 %s72, 1
        %s191 = smul.addr %s190, 8
        %s192 = scalar_lea.vmem [#allocation6], %s191
        // Predicated region
        $region33: #{tpu_custom_call.1} parent=27 // pred_check
          %p193 = pneg %p85
        $region34: #{tpu_custom_call.1} parent=27 // pred_check_branch
          %195 = sbr.rel (%p193) target = $region36
        $region35: #{tpu_custom_call.1} parent=27 // pred_region
          %196 = dma.done %s189, 128
        $region36: #{tpu_custom_call.1} parent=27 // pred_fallthru
          _
        %s197 = sand.u32 %s44, 1
        %s198 = scalar_lea.sflag [#allocation4], %s197
        %s199 = sand.u32 %s44, 1
        %s200 = smul.addr %s199, 8
        %s201 = scalar_lea.vmem [#allocation3], %s200
        %p202 = pneg %p57
        %p203 = pneg %p54
        %s204 = sand.u32 %s72, 1
        %s205 = scalar_lea.sflag [#allocation7], %s204
        %s206 = sand.u32 %s72, 1
        %s207 = smul.addr %s206, 8
        %s208 = scalar_lea.vmem [#allocation6], %s207
        %p209 = pneg %p85
        %p210 = pneg %p82
        %p211 = pneg %p111
        %p212 = pneg %p108
        %s213 = sand.u32 %s98, 1
        %s214 = scalar_lea.sflag [#allocation5], %s213
        %s215 = sand.u32 %s98, 1
        %s216 = smul.addr %s215, 8
        %s217 = scalar_lea.vmem [#allocation8], %s216
        %s218 = smul.u32 2, %s27
        %s219 = smul.u32 2, %s27
        %v220 = vld [vmem:[%s183] sm:$0xff]
        %v221 = vld [vmem:[%s192] sm:$0xff]
        %v223 = vcombine.high %v220, %v220
        %v226 = vcombine.low %v221, %v221
        %vm228 = vcmask 1043456
        %v229 = vsel %vm228, %v220, %v226
        %v230 = vsel %vm228, %v223, %v221
        %231 = vmatprep.subr.mxu0 %v230
        %232 = vmatpush1.xpose.msra.mxu0 %v229
        %233 = vmatprep.subr.mxu0 0.0
        %234 = vmatpush1.xpose.msra.mxu0 0.0
        %235 = vmatprep.subr.mxu0 0.0
        %236 = vmatpush1.xpose.msra.mxu0 0.0
        %237 = vmatprep.subr.mxu0 0.0
        %238 = vmatpush1.xpose.msra.mxu0 0.0
        %239 = vmatprep.subr.mxu0 0.0
        %240 = vmatpush1.xpose.msra.mxu0 0.0
        %241 = vmatprep.subr.mxu0 0.0
        %242 = vmatpush1.xpose.msra.mxu0 0.0
        %243 = vmatprep.subr.mxu0 0.0
        %244 = vmatpush1.xpose.msra.mxu0 0.0
        %245 = vmatprep.subr.mxu0 0.0
        %246 = vmatpush1.xpose.msra.mxu0 0.0
        %247 = vmatprep.subr.mxu0 0.0
        %248 = vmatpush1.xpose.msra.mxu0 0.0
        %249 = vmatprep.subr.mxu0 0.0
        %250 = vmatpush1.xpose.msra.mxu0 0.0
        %251 = vmatprep.subr.mxu0 0.0
        %252 = vmatpush1.xpose.msra.mxu0 0.0
        %253 = vmatprep.subr.mxu0 0.0
        %254 = vmatpush1.xpose.msra.mxu0 0.0
        %255 = vmatprep.subr.mxu0 0.0
        %256 = vmatpush1.xpose.msra.mxu0 0.0
        %257 = vmatprep.subr.mxu0 0.0
        %258 = vmatpush1.xpose.msra.mxu0 0.0
        %259 = vmatprep.subr.mxu0 0.0
        %260 = vmatpush1.xpose.msra.mxu0 0.0
        %261 = vmatprep.subr.mxu0 0.0
        %262 = vmatpush1.xpose.msra.mxu0 0.0
        %263 = vmatprep.subr.mxu0 0.0
        %264 = vmatpush1.xpose.msra.mxu0 0.0
        %265 = vmatprep.subr.mxu0 0.0
        %266 = vmatpush1.xpose.msra.mxu0 0.0
        %267 = vmatprep.subr.mxu0 0.0
        %268 = vmatpush1.xpose.msra.mxu0 0.0
        %269 = vmatprep.subr.mxu0 0.0
        %270 = vmatpush1.xpose.msra.mxu0 0.0
        %271 = vmatprep.subr.mxu0 0.0
        %272 = vmatpush1.xpose.msra.mxu0 0.0
        %273 = vmatprep.subr.mxu0 0.0
        %274 = vmatpush1.xpose.msra.mxu0 0.0
        %275 = vmatprep.subr.mxu0 0.0
        %276 = vmatpush1.xpose.msra.mxu0 0.0
        %277 = vmatprep.subr.mxu0 0.0
        %278 = vmatpush1.xpose.msra.mxu0 0.0
        %279 = vmatprep.subr.mxu0 0.0
        %280 = vmatpush1.xpose.msra.mxu0 0.0
        %281 = vmatprep.subr.mxu0 0.0
        %282 = vmatpush1.xpose.msra.mxu0 0.0
        %283 = vmatprep.subr.mxu0 0.0
        %284 = vmatpush1.xpose.msra.mxu0 0.0
        %285 = vmatprep.subr.mxu0 0.0
        %286 = vmatpush1.xpose.msra.mxu0 0.0
        %287 = vmatprep.subr.mxu0 0.0
        %288 = vmatpush1.xpose.msra.mxu0 0.0
        %289 = vmatprep.subr.mxu0 0.0
        %290 = vmatpush1.xpose.msra.mxu0 0.0
        %291 = vmatprep.subr.mxu0 0.0
        %292 = vmatpush1.xpose.msra.mxu0 0.0
        %293 = vmatprep.subr.mxu0 0.0
        %294 = vmatpush1.xpose.msra.mxu0 0.0
        %295 = vmatprep.mubr.f32.mxu0 %v230
        %296 = vmatmul.mubr.f32.gmra.mrb[0].mxu0 %v229
        %v297 = vpop.f32.mrb[0].mxu0
        %v298 = vadd.f32 0.0, %v297
        %v299 = vpop.f32.mrb[0].mxu0
        %300 = vdwg.mxu0
        %p301 = scmp.eq.s32.totalorder %s27, 0
        // Predicated region
        $region37: #{tpu_custom_call.1} parent=27 // pred_check
          %p302 = pneg %p301
        $region38: #{tpu_custom_call.1} parent=27 // pred_check_branch
          %304 = sbr.rel (%p302) target = $region40
        $region39: #{tpu_custom_call.1} parent=27 // pred_region
          %vm305 = vcmask 64512
          %306 = vst.msk [vmem:[#allocation2] sm:$0xff] %vm305, %v298
        $region40: #{tpu_custom_call.1} parent=27 // pred_fallthru
          _
        %p307 = scmp.gt.s32.totalorder %s27, 0
        // Predicated region
        $region41: #{tpu_custom_call.1} parent=27 // pred_check
          %p308 = pneg %p307
        $region42: #{tpu_custom_call.1} parent=27 // pred_check_branch
          %310 = sbr.rel (%p308) target = $region44
        $region43: #{tpu_custom_call.1} parent=27 // pred_region
          %v311 = vld [vmem:[#allocation2] sm:$0xff]
          %v312 = vadd.f32 %v311, %v298
          %vm313 = vcmask 64512
          %314 = vst.msk [vmem:[#allocation2] sm:$0xff] %vm313, %v312
        $region44: #{tpu_custom_call.1} parent=27 // pred_fallthru
          _
        // Predicated region
        $region45: #{tpu_custom_call.1} parent=27 // pred_check
          %p315 = pneg %p301
        $region46: #{tpu_custom_call.1} parent=27 // pred_check_branch
          %317 = sbr.rel (%p315) target = $region48
        $region47: #{tpu_custom_call.1} parent=27 // pred_region
          %v318 = vld [vmem:[#allocation2] sm:$0xff]
          %v320 = vrot.slane %v318, 4
          %321 = vrot.lane.b32.xlu0 %v320, 124
          %v322 = vpop.permute.xlu0 %321
          %v324 = vsub.f32 %v318, %v322
          %v325 = vand.u32 2147483647, %v324
          %vm326 = vcmask 27648
          %v327 = vsel %vm326, %v325, 0.0
          %328 = vadd.xlane.f32.xlu0 %v327
          %v329 = vpop.xlane.xlu0 %328
          %v330 = vrot.slane %v329, 4
          %v331 = vadd.f32 %v329, %v330
          %v332 = vrot.slane %v331, 2
          %v333 = vadd.f32 %v331, %v332
          %v334 = vrot.slane %v333, 1
          %v335 = vadd.f32 %v333, %v334
          %s336 = vtos %v335
          %v337 = vstv %s336
          %338 = vst [vmem:[%s217] sm:$0xff] %v337
        $region48: #{tpu_custom_call.1} parent=27 // pred_fallthru
          _
        %s339 = sand.u32 %s98, 1
        %s340 = scalar_lea.sflag [#allocation5], %s339
        %s341 = sand.u32 %s98, 1
        %s342 = smul.addr %s341, 8
        %s343 = scalar_lea.vmem [#allocation8], %s342
        // Predicated region
        $region49: #{tpu_custom_call.1} parent=27 // pred_check
          %p344 = pneg %p108
        $region50: #{tpu_custom_call.1} parent=27 // pred_check_branch
          %346 = sbr.rel (%p344) target = $region52
        $region51: #{tpu_custom_call.1} parent=27 // pred_region
          %s348 = ssub.s32 128, 128
          %349 = vsyncadd %s340, %s348
          %s350 = smul.addr %s26, 128
          %s351 = scalar_lea.hbm %s2, %s350
          %s353 = sshll.u32 %s343, 4
          %s354 = int_to_ptr.vmem [resolvable:$true] %s353
          %356 = dma.vmem_to_hbm [thread:$0]  %s354, 128, %s351, %s340
        $region52: #{tpu_custom_call.1} parent=27 // pred_fallthru
          _
      $region28: #{tpu_custom_call.1} parent=5 // pred_fallthru
        _
      %p357 = scmp.le.s32.totalorder 2, %s17
      // Predicated region
      $region53: #{tpu_custom_call.1} parent=5 // pred_check
        %p358 = pneg %p357
      $region54: #{tpu_custom_call.1} parent=5 // pred_check_branch
        %360 = sbr.rel (%p358) target = $region56
      $region55: #{tpu_custom_call.1} parent=5 // pred_region
        %s361 = ssub.s32 %s17, 2
        // Predicated region
        $region57: #{tpu_custom_call.1} parent=55 // pred_check
          %p362 = pneg %p114
        $region58: #{tpu_custom_call.1} parent=55 // pred_check_branch
          %364 = sbr.rel (%p362) target = $region60
        $region59: #{tpu_custom_call.1} parent=55 // pred_region
          %s365 = sand.u32 %s99, 1
          %s366 = scalar_lea.sflag [#allocation5], %s365
          %s367 = sand.u32 %s99, 1
          %s368 = smul.addr %s367, 8
          %s369 = scalar_lea.vmem [#allocation8], %s368
          %370 = dma.done %s366, 128
        $region60: #{tpu_custom_call.1} parent=55 // pred_fallthru
          _
      $region56: #{tpu_custom_call.1} parent=5 // pred_fallthru
        _
    $region6: #{tpu_custom_call.1} parent=1 // loop_footer
      %s21 = sadd.s32 1, %s17
    $region7: #{tpu_custom_call.1} parent=1 // loop_footer_branch
      %16 = sbr.rel target = $region3
    $region8: #{tpu_custom_call.1} parent=1 // loop_exit
      _
    %371 = vsyncpa [#allocation4], 1
    %s372 = scalar_lea.sflag [#allocation4], 1
    %373 = vsyncpa %s372, 1
    %374 = vsyncpa [#allocation7], 1
    %s375 = scalar_lea.sflag [#allocation7], 1
    %376 = vsyncpa %s375, 1
    %377 = vsyncpa [#allocation5], 1
    %s378 = scalar_lea.sflag [#allocation5], 1
    %379 = vsyncpa %s378, 1

</llo_original>
